<compile_context>
chip_gen: v7x
topology: tpu7x:2x2x1
jax: 0.10.0
libtpu: 0.0.40
codegen_flags: <defaults>
</compile_context>

<pallas_src>
import jax
import jax.numpy as jnp
from jax import lax
from jax.experimental import pallas as pl
from jax.experimental.pallas import tpu as pltpu

_EPS = 1e-8  # torch.nn.functional.cosine_similarity default eps


def _round_up(x, m):
    return (x + m - 1) // m * m


# ---------------------------------------------------------------------------
# Kernel 1: tiled projection matmul + L2 row normalization (fused epilogue)
#   grid = (M_tiles, K_tiles); f32 accumulator in VMEM scratch; normalize on
#   the last K step only.
# ---------------------------------------------------------------------------
def _proj_norm_kernel(x_ref, w_ref, o_ref, acc_ref):
    k = pl.program_id(1)

    @pl.when(k == 0)
    def _():
        acc_ref[...] = jnp.zeros_like(acc_ref)

    acc_ref[...] += jnp.dot(x_ref[...], w_ref[...],
                            preferred_element_type=jnp.float32)

    @pl.when(k == pl.num_programs(1) - 1)
    def _():
        y = acc_ref[...]
        ss = jnp.sum(y * y, axis=-1, keepdims=True)
        # feat / feat.norm(dim=1, keepdim=True)  (rsqrt -> EUP slot)
        o_ref[...] = (y * lax.rsqrt(ss)).astype(o_ref.dtype)


def project_and_normalize(x, w, *, tm_max=256, tk_max=512):
    """x: (M, K) f32, w: (K, D) f32 -> L2-normalized (M_pad, D_pad) f32."""
    m, k = x.shape
    k2, d = w.shape
    assert k == k2

    m_align = _round_up(m, 8)
    tm = min(tm_max, m_align)
    m_pad = _round_up(m_align, tm)

    k_align = _round_up(k, 128)
    tk = min(tk_max, k_align)
    k_pad = _round_up(k_align, tk)

    d_pad = _round_up(d, 128)

    # bf16 MXU operands (f32 accumulation inside the kernel); zero padding.
    xp = jnp.zeros((m_pad, k_pad), jnp.bfloat16).at[:m, :k].set(
        x.astype(jnp.bfloat16))
    wp = jnp.zeros((k_pad, d_pad), jnp.bfloat16).at[:k, :d].set(
        w.astype(jnp.bfloat16))

    grid = (m_pad // tm, k_pad // tk)
    out = pl.pallas_call(
        _proj_norm_kernel,
        out_shape=jax.ShapeDtypeStruct((m_pad, d_pad), jnp.float32),
        grid_spec=pltpu.PrefetchScalarGridSpec(
            num_scalar_prefetch=0,
            grid=grid,
            in_specs=[
                pl.BlockSpec((tm, tk), lambda i, j: (i, j)),
                pl.BlockSpec((tk, d_pad), lambda i, j: (j, 0)),
            ],
            out_specs=pl.BlockSpec((tm, d_pad), lambda i, j: (i, 0)),
            scratch_shapes=[pltpu.VMEM((tm, d_pad), jnp.float32)],
        ),
        compiler_params=pltpu.CompilerParams(
            dimension_semantics=("parallel", "arbitrary"),
            vmem_limit_bytes=32 * 1024 * 1024,
        ),
    )(xp, wp)
    return out  # padded; caller slices real rows / columns


# ---------------------------------------------------------------------------
# Kernel 2: fused text projection + L2 norm + directional cosine similarity
#   cos_sim(img2 - img1, txt2 - txt1) along the feature axis.
# ---------------------------------------------------------------------------
def _text_proj_dirsim_kernel(p1_ref, p2_ref, w_ref, i1_ref, i2_ref, o_ref):
    w = w_ref[...]
    y1 = jnp.dot(p1_ref[...], w, preferred_element_type=jnp.float32)
    y2 = jnp.dot(p2_ref[...], w, preferred_element_type=jnp.float32)
    y1 = y1 * lax.rsqrt(jnp.sum(y1 * y1, axis=-1, keepdims=True))
    y2 = y2 * lax.rsqrt(jnp.sum(y2 * y2, axis=-1, keepdims=True))

    a = i2_ref[...] - i1_ref[...]          # image features already normalized
    b = y2 - y1
    dot_ab = jnp.sum(a * b, axis=-1, keepdims=True)
    a_ss = jnp.sum(a * a, axis=-1, keepdims=True)
    b_ss = jnp.sum(b * b, axis=-1, keepdims=True)
    inv = lax.rsqrt(jnp.maximum(a_ss * b_ss, _EPS * _EPS))
    o_ref[...] = (dot_ab * inv).astype(o_ref.dtype)


def text_project_and_dirsim(pooled_one, pooled_two, w_txt,
                            img_feat_one, img_feat_two, n_real):
    """pooled_*: (N, E) f32; w_txt: (E, D); img_feat_*: (N_pad, D_pad) f32."""
    n, e = pooled_one.shape
    e2, d = w_txt.shape
    assert e == e2
    n_pad, d_pad = img_feat_one.shape
    e_pad = _round_up(e, 128)

    p1 = jnp.zeros((n_pad, e_pad), jnp.float32).at[:n, :e].set(
        pooled_one.astype(jnp.float32))
    p2 = jnp.zeros((n_pad, e_pad), jnp.float32).at[:n, :e].set(
        pooled_two.astype(jnp.float32))
    wp = jnp.zeros((e_pad, d_pad), jnp.float32).at[:e, :d].set(
        w_txt.astype(jnp.float32))

    full = lambda shape: pl.BlockSpec(shape, lambda: (0, 0))
    out = pl.pallas_call(
        _text_proj_dirsim_kernel,
        out_shape=jax.ShapeDtypeStruct((n_pad, 1), jnp.float32),
        in_specs=[
            full((n_pad, e_pad)),
            full((n_pad, e_pad)),
            full((e_pad, d_pad)),
            full((n_pad, d_pad)),
            full((n_pad, d_pad)),
        ],
        out_specs=full((n_pad, 1)),
        compiler_params=pltpu.CompilerParams(
            vmem_limit_bytes=32 * 1024 * 1024),
    )(p1, p2, wp, img_feat_one, img_feat_two)
    return out[:n_real, 0]  # (N,), like F.cosine_similarity(dim=1)


# ---------------------------------------------------------------------------
# Forward: synthetic encoders (glue) + the two Pallas kernels
# ---------------------------------------------------------------------------
def directional_similarity_forward(image_one, image_two, tokens_one, tokens_two,
                                   w_img, emb_table, w_txt):
    n = image_one.shape[0]
    n_pad = _round_up(n, 8)

    # ---- images: batch both encodes into ONE projection call so the large
    #      (K, D) weight is streamed from HBM once.
    x1 = image_one.reshape(n, -1).astype(jnp.float32)
    x2 = image_two.reshape(n, -1).astype(jnp.float32)
    k = x1.shape[1]
    x = jnp.zeros((2 * n_pad, k), jnp.float32)
    x = x.at[:n].set(x1).at[n_pad:n_pad + n].set(x2)

    img_feats = project_and_normalize(x, w_img)          # (>=2*n_pad, D_pad)
    img_feat_one = img_feats[:n_pad]
    img_feat_two = img_feats[n_pad:2 * n_pad]

    # ---- text: embedding lookup + mean pool (glue), then fused
    #      project + L2-norm + directional cosine similarity.
    pooled_one = jnp.mean(jnp.take(emb_table, tokens_one, axis=0), axis=1)
    pooled_two = jnp.mean(jnp.take(emb_table, tokens_two, axis=0), axis=1)

    return text_project_and_dirsim(pooled_one, pooled_two, w_txt,
                                   img_feat_one, img_feat_two, n)


# ---------------------------------------------------------------------------
# Pure-JAX reference (bf16-cast image matmul to match kernel operand dtype)
# ---------------------------------------------------------------------------
def _reference(image_one, image_two, tokens_one, tokens_two,
               w_img, emb_table, w_txt):
    def enc_img(img):
        x = img.reshape(img.shape[0], -1).astype(jnp.bfloat16).astype(jnp.float32)
        wb = w_img.astype(jnp.bfloat16).astype(jnp.float32)
        y = x @ wb
        return y / jnp.linalg.norm(y, axis=1, keepdims=True)

    def enc_txt(tok):
        p = jnp.mean(jnp.take(emb_table, tok, axis=0), axis=1)
        y = p @ w_txt
        return y / jnp.linalg.norm(y, axis=1, keepdims=True)

    i1, i2 = enc_img(image_one), enc_img(image_two)
    t1, t2 = enc_txt(tokens_one), enc_txt(tokens_two)
    a, b = i2 - i1, t2 - t1
    num = jnp.sum(a * b, axis=1)
    den = jnp.maximum(jnp.linalg.norm(a, axis=1) * jnp.linalg.norm(b, axis=1),
                      _EPS)
    return num / den


# ---------------------------------------------------------------------------
if __name__ == "__main__":
    key = jax.random.PRNGKey(0)
    k_i1, k_i2, k_t1, k_t2, k_wi, k_emb, k_wt = jax.random.split(key, 7)

    # Small, module-consistent shapes
    N, C, H, W = 2, 4, 16, 16      # images, NCHW
    L, V, E = 8, 32, 32            # seq len, vocab, text hidden
    D = 64                         # shared embedding (projection) dim

    image_one = jax.random.uniform(k_i1, (N, C, H, W), dtype=jnp.float32)
    image_two = jax.random.uniform(k_i2, (N, C, H, W), dtype=jnp.float32)
    tokens_one = jax.random.randint(k_t1, (N, L), 0, V, dtype=jnp.int32)
    tokens_two = jax.random.randint(k_t2, (N, L), 0, V, dtype=jnp.int32)

    # Deterministic synthetic parameters
    w_img = jax.random.normal(k_wi, (C * H * W, D), dtype=jnp.float32) * 0.02
    emb_table = jax.random.normal(k_emb, (V, E), dtype=jnp.float32) * 0.02
    w_txt = jax.random.normal(k_wt, (E, D), dtype=jnp.float32) * 0.02

    sim = directional_similarity_forward(image_one, image_two,
                                         tokens_one, tokens_two,
                                         w_img, emb_table, w_txt)
    sim = jax.block_until_ready(sim)
    assert sim.shape == (N,)

    ref = _reference(image_one, image_two, tokens_one, tokens_two,
                     w_img, emb_table, w_txt)
    assert jnp.all(jnp.isfinite(sim))
    assert jnp.allclose(sim, ref, atol=5e-3, rtol=5e-2), (sim, ref)

    print("KERNEL_OK")
</pallas_src>

<mosaic_0001>
module attributes {stable_mosaic.version = 11 : i64} {
  func.func @_proj_norm_kernel(%arg0: i32, %arg1: i32, %arg2: memref<16x512xbf16, #tpu.memory_space<vmem>>, %arg3: memref<512x128xbf16, #tpu.memory_space<vmem>>, %arg4: memref<16x128xf32, #tpu.memory_space<vmem>>, %arg5: memref<16x128xf32, #tpu.memory_space<vmem>>) attributes {dimension_semantics = [#tpu.dimension_semantics<parallel>, #tpu.dimension_semantics<arbitrary>], iteration_bounds = array<i64: 1, 2>, scalar_prefetch = 0 : i64, scratch_operands = 1 : i64, tpu.core_type = #tpu.core_type<tc>, window_params = [{transform_indices = @transform_0, window_bounds = array<i64: 16, 512>}, {transform_indices = @transform_1, window_bounds = array<i64: 512, 128>}, {transform_indices = @transform_2, window_bounds = array<i64: 16, 128>}]} {
    %c0_i32 = arith.constant 0 : i32
    %0 = arith.cmpi eq, %arg1, %c0_i32 : i32
    %1 = arith.extui %0 : i1 to i32
    %c0_i32_0 = arith.constant 0 : i32
    %2 = arith.cmpi ne, %1, %c0_i32_0 : i32
    scf.if %2 {
      %cst_9 = arith.constant 0.000000e+00 : f32
      %12 = vector.broadcast %cst_9 : f32 to vector<16x128xf32>
      %c0_10 = arith.constant 0 : index
      %c0_11 = arith.constant 0 : index
      %13 = vector.load %arg5[%c0_10, %c0_11] : memref<16x128xf32, #tpu.memory_space<vmem>>, vector<16x128xf32>
      tpu.vector_store %arg5[%c0_10, %c0_11], %12 {strides = array<i32>} : memref<16x128xf32, #tpu.memory_space<vmem>>, vector<16x128xf32>,
    } else {
    }
    %c0 = arith.constant 0 : index
    %c0_1 = arith.constant 0 : index
    %3 = vector.load %arg5[%c0, %c0_1] : memref<16x128xf32, #tpu.memory_space<vmem>>, vector<16x128xf32>
    %c0_2 = arith.constant 0 : index
    %c0_3 = arith.constant 0 : index
    %4 = vector.load %arg2[%c0_2, %c0_3] : memref<16x512xbf16, #tpu.memory_space<vmem>>, vector<16x512xbf16>
    %c0_4 = arith.constant 0 : index
    %c0_5 = arith.constant 0 : index
    %5 = vector.load %arg3[%c0_4, %c0_5] : memref<512x128xbf16, #tpu.memory_space<vmem>>, vector<512x128xbf16>
    %cst = arith.constant dense<0.000000e+00> : vector<16x128xf32>
    %6 = tpu.matmul %4, %5, %cst {dimension_numbers = #tpu.dot_dimension_numbers<[1], [0], [0], [1], [0, 0, 1, 1], [], []>} : vector<16x512xbf16>, vector<512x128xbf16>, vector<16x128xf32> -> vector<16x128xf32>
    %7 = arith.addf %3, %6 : vector<16x128xf32>
    %c0_6 = arith.constant 0 : index
    %c0_7 = arith.constant 0 : index
    %8 = vector.load %arg5[%c0_6, %c0_7] : memref<16x128xf32, #tpu.memory_space<vmem>>, vector<16x128xf32>
    tpu.vector_store %arg5[%c0_6, %c0_7], %7 {strides = array<i32>} : memref<16x128xf32, #tpu.memory_space<vmem>>, vector<16x128xf32>,
    %c1_i32 = arith.constant 1 : i32
    %9 = arith.cmpi eq, %arg1, %c1_i32 : i32
    %10 = arith.extui %9 : i1 to i32
    %c0_i32_8 = arith.constant 0 : i32
    %11 = arith.cmpi ne, %10, %c0_i32_8 : i32
    scf.if %11 {
      %c0_9 = arith.constant 0 : index
      %c0_10 = arith.constant 0 : index
      %12 = vector.load %arg5[%c0_9, %c0_10] : memref<16x128xf32, #tpu.memory_space<vmem>>, vector<16x128xf32>
      %13 = arith.mulf %12, %12 : vector<16x128xf32>
      %cst_11 = arith.constant dense<0.000000e+00> : vector<16xf32>
      %14 = vector.multi_reduction <add>, %13, %cst_11 [1] : vector<16x128xf32> to vector<16xf32>
      %15 = vector.shape_cast %14 : vector<16xf32> to vector<16x1xf32>
      %16 = math.rsqrt %15 : vector<16x1xf32>
      %17 = vector.broadcast %16 : vector<16x1xf32> to vector<16x128xf32>
      %18 = arith.mulf %12, %17 : vector<16x128xf32>
      %c0_12 = arith.constant 0 : index
      %c0_13 = arith.constant 0 : index
      %19 = vector.load %arg4[%c0_12, %c0_13] : memref<16x128xf32, #tpu.memory_space<vmem>>, vector<16x128xf32>
      tpu.vector_store %arg4[%c0_12, %c0_13], %18 {strides = array<i32>} : memref<16x128xf32, #tpu.memory_space<vmem>>, vector<16x128xf32>,
    } else {
    }
    return
  }
  func.func @transform_0(%arg0: i32, %arg1: i32) -> (i32, i32) {
    %c0_i32 = arith.constant 0 : i32
    return %arg0, %arg1 : i32, i32
  }
  func.func @transform_1(%arg0: i32, %arg1: i32) -> (i32, i32) {
    %c0_i32 = arith.constant 0 : i32
    %c0_i32_0 = arith.constant 0 : i32
    return %arg1, %c0_i32 : i32, i32
  }
  func.func @transform_2(%arg0: i32, %arg1: i32) -> (i32, i32) {
    %c0_i32 = arith.constant 0 : i32
    %c0_i32_0 = arith.constant 0 : i32
    return %arg0, %c0_i32 : i32, i32
  }
}

</mosaic_0001>

<llo_original>
// kernel: tpu_custom_call.1
$region0: #{tpu_custom_call.1}
  #allocation0 [shape = 'u32[]', space=smem, size = 0x4, offset = 0x4, fixed_abs, tag = 'smem constant byte address 0x4 - core index']
  #allocation1 [shape = 'u32[144,128]{1,0:T(1,128)}', space=vmem, size = 0x12000, scoped, tag = 'internal scratch']
  #allocation2 [shape = 'f32[16,128]{1,0:T(8,128)}', space=vmem, size = 0x2000, scoped, tag = 'scratch operand']
  %s0 = inlined_call_operand.hbm [shape: bf16[16,1024], index: 0, kind: input, shape index: {}]
  %s1 = inlined_call_operand.hbm [shape: bf16[1024,128], index: 1, kind: input, shape index: {}]
  %s2 = inlined_call_operand.hbm [shape: f32[16,128], index: 2, kind: output, shape index: {}]
  %s3 = sld [smem:[#allocation0]]
  $region57: #{tpu_custom_call.1} parent=0
    _
  %s5 = ssub.s32 1, %s3
  %s6 = scalar_select 0, %s5, %s3
  $region1: #{tpu_custom_call.1} parent=0
    #allocation3 [shape = 'u8[32768]{0}', space=vmem, size = 0x8000, scoped, tag = 'input window, operand 0']
    #allocation4 [shape = 's32[2]{0}', space=sflag, size = 0x8, scoped, tag = 'scoped memory for tpu_custom_call.1']
    #allocation5 [shape = 's32[2]{0}', space=sflag, size = 0x8, scoped, tag = 'scoped memory for tpu_custom_call.1']
    #allocation6 [shape = 'u8[262144]{0}', space=vmem, size = 0x40000, scoped, tag = 'input window, operand 1']
    #allocation7 [shape = 's32[2]{0}', space=sflag, size = 0x8, scoped, tag = 'scoped memory for tpu_custom_call.1']
    #allocation8 [shape = 'u8[8192]{0}', space=vmem, size = 0x2000, scoped, tag = 'output window, operand 0, single buffered']
    %7 = vsyncpa [#allocation4], 0
    %s8 = scalar_lea.sflag [#allocation4], 1
    %9 = vsyncpa %s8, 0
    %10 = vsyncpa [#allocation7], 0
    %s11 = scalar_lea.sflag [#allocation7], 1
    %12 = vsyncpa %s11, 0
    %13 = vsyncpa [#allocation5], 0
    loop: start=0, step=1, limit=4
    $region2: #{tpu_custom_call.1} parent=1 // loop_pre_header
      _
    $region3: #{tpu_custom_call.1} parent=1 // loop_header
      %s15 = sphi 0, %s19
      %p16 = scmp.ge.s32.totalorder %s15, 4
      %s22 = sphi 0, %s34
      %s23 = sphi 0, %s30
      %s24 = sphi 0, %s22
      %s25 = sphi 0, %s23
      %s26 = sphi 0, %s24
      %s27 = sphi 0, %s25
      %s39 = sphi 0, %s41
      %s42 = sphi 0, %s39
      %s43 = sphi 0, %s42
      %s59 = sphi 0, %s43
      %s65 = sphi 0, %s67
      %s68 = sphi 0, %s65
      %s69 = sphi 0, %s68
      %s85 = sphi 0, %s69
      %s91 = sphi 0, %s93
      %s94 = sphi 0, %s91
      %s95 = sphi 0, %s94
      %s111 = sphi 0, %s95
    $region4: #{tpu_custom_call.1} parent=1 // loop_header_branch
      %18 = sbr.rel (%p16) target = $region8
    $region5: #{tpu_custom_call.1} parent=1 // loop_body
      %s20 = ssub.s32 %s15, 1
      %s21 = ssub.s32 %s15, 2
      %s28 = sadd.s32 1, %s23
      %p29 = scmp.ge.s32.totalorder %s28, 2
      %s30 = scalar_select %p29, 0, %s28
      %s31 = sadd.s32 1, %s22
      %s32 = scalar_select %p29, %s31, %s22
      %p33 = scmp.ge.s32.totalorder %s32, 1
      %s34 = scalar_select %p33, 0, %s32
      %s35 = ssub.s32 %s22, %s34
      %s36 = ssub.s32 %s23, %s30
      %s37 = sor.u32 %s35, %s36
      %p38 = scmp.eq.s32.totalorder %s37, 0
      %s40 = sadd.s32 %s39, 1
      %s41 = scalar_select %p38, %s39, %s40
      %p44 = pneg %p38
      %p45 = scmp.eq.s32.totalorder %s15, 1
      %p46 = por %p44, %p45
      %p47 = scmp.ne.s32.totalorder %s39, %s42
      %p48 = scmp.eq.s32.totalorder %s15, 0
      %p49 = por %p47, %p48
      %p50 = scmp.ne.s32.totalorder %s39, %s42
      %p51 = scmp.eq.s32.totalorder %s20, 1
      %p52 = por %p50, %p51
      %p53 = scmp.ne.s32.totalorder %s42, %s43
      %p54 = scmp.eq.s32.totalorder %s20, 0
      %p55 = por %p53, %p54
      %p56 = scmp.ne.s32.totalorder %s42, %s43
      %p57 = scmp.eq.s32.totalorder %s21, 1
      %p58 = por %p56, %p57
      %p60 = scmp.ne.s32.totalorder %s43, %s59
      %p61 = scmp.eq.s32.totalorder %s21, 0
      %p62 = por %p60, %p61
      %s63 = ssub.s32 %s23, %s30
      %p64 = scmp.eq.s32.totalorder %s63, 0
      %s66 = sadd.s32 %s65, 1
      %s67 = scalar_select %p64, %s65, %s66
      %p70 = pneg %p64
      %p71 = scmp.eq.s32.totalorder %s15, 1
      %p72 = por %p70, %p71
      %p73 = scmp.ne.s32.totalorder %s65, %s68
      %p74 = scmp.eq.s32.totalorder %s15, 0
      %p75 = por %p73, %p74
      %p76 = scmp.ne.s32.totalorder %s65, %s68
      %p77 = scmp.eq.s32.totalorder %s20, 1
      %p78 = por %p76, %p77
      %p79 = scmp.ne.s32.totalorder %s68, %s69
      %p80 = scmp.eq.s32.totalorder %s20, 0
      %p81 = por %p79, %p80
      %p82 = scmp.ne.s32.totalorder %s68, %s69
      %p83 = scmp.eq.s32.totalorder %s21, 1
      %p84 = por %p82, %p83
      %p86 = scmp.ne.s32.totalorder %s69, %s85
      %p87 = scmp.eq.s32.totalorder %s21, 0
      %p88 = por %p86, %p87
      %s89 = ssub.s32 %s22, %s34
      %p90 = scmp.eq.s32.totalorder %s89, 0
      %s92 = sadd.s32 %s91, 1
      %s93 = scalar_select %p90, %s91, %s92
      %p96 = pneg %p90
      %p97 = scmp.eq.s32.totalorder %s15, 1
      %p98 = por %p96, %p97
      %p99 = scmp.ne.s32.totalorder %s91, %s94
      %p100 = scmp.eq.s32.totalorder %s15, 0
      %p101 = por %p99, %p100
      %p102 = scmp.ne.s32.totalorder %s91, %s94
      %p103 = scmp.eq.s32.totalorder %s20, 1
      %p104 = por %p102, %p103
      %p105 = scmp.ne.s32.totalorder %s94, %s95
      %p106 = scmp.eq.s32.totalorder %s20, 0
      %p107 = por %p105, %p106
      %p108 = scmp.ne.s32.totalorder %s94, %s95
      %p109 = scmp.eq.s32.totalorder %s21, 1
      %p110 = por %p108, %p109
      %p112 = scmp.ne.s32.totalorder %s95, %s111
      %p113 = scmp.eq.s32.totalorder %s21, 0
      %p114 = por %p112, %p113
      %p115 = scmp.le.s32.totalorder 1, %s15
      %p116 = scmp.lt.s32.totalorder %s15, 3
      %p117 = pnand %p115, %p116
      %p118 = pneg %p117
      // Predicated region
      $region9: #{tpu_custom_call.1} parent=5 // pred_check
        _
      $region10: #{tpu_custom_call.1} parent=5 // pred_check_branch
        %120 = sbr.rel (%p117) target = $region12
      $region11: #{tpu_custom_call.1} parent=5 // pred_region
        %s121 = ssub.s32 %s15, 1
      $region12: #{tpu_custom_call.1} parent=5 // pred_fallthru
        _
      %p122 = scmp.lt.s32.totalorder %s15, 2
      // Predicated region
      $region13: #{tpu_custom_call.1} parent=5 // pred_check
        %p123 = pneg %p122
      $region14: #{tpu_custom_call.1} parent=5 // pred_check_branch
        %125 = sbr.rel (%p123) target = $region16
      $region15: #{tpu_custom_call.1} parent=5 // pred_region
        // Predicated region
        $region17: #{tpu_custom_call.1} parent=15 // pred_check
          %p126 = pneg %p49
        $region18: #{tpu_custom_call.1} parent=15 // pred_check_branch
          %128 = sbr.rel (%p126) target = $region20
        $region19: #{tpu_custom_call.1} parent=15 // pred_region
          %s129 = sand.u32 %s39, 1
          %s130 = scalar_lea.sflag [#allocation4], %s129
          %s131 = sand.u32 %s39, 1
          %s132 = smul.addr %s131, 32
          %s133 = scalar_lea.vmem [#allocation3], %s132
          %s134 = smul.u32 2, %s22
          %s135 = smul.u32 4, %s23
          %s137 = ssub.s32 512, 512
          %138 = vsyncadd %s130, %s137
          %s139 = smul.addr %s134, 8
          %s140 = sadd.s32 %s135, %s139
          %s141 = smul.addr %s140, 64
          %s142 = scalar_lea.hbm %s0, %s141
          %s143 = sshll.u32 %s133, 4
          %s144 = int_to_ptr.vmem [resolvable:$true] %s143
          %149 = dma.hbm_to_vmem [thread:$0]  %s142, 512, %s144, %s130, 512, 256, 16
        $region20: #{tpu_custom_call.1} parent=15 // pred_fallthru
          _
        // Predicated region
        $region21: #{tpu_custom_call.1} parent=15 // pred_check
          %p150 = pneg %p75
        $region22: #{tpu_custom_call.1} parent=15 // pred_check_branch
          %152 = sbr.rel (%p150) target = $region24
        $region23: #{tpu_custom_call.1} parent=15 // pred_region
          %s153 = sand.u32 %s65, 1
          %s154 = scalar_lea.sflag [#allocation7], %s153
          %s155 = sand.u32 %s65, 1
          %s156 = smul.addr %s155, 256
          %s157 = scalar_lea.vmem [#allocation6], %s156
          %s158 = smul.u32 64, %s23
          %s160 = ssub.s32 4096, 4096
          %161 = vsyncadd %s154, %s160
          %s162 = smul.addr %s158, 64
          %s163 = scalar_lea.hbm %s1, %s162
          %s164 = sshll.u32 %s157, 4
          %s165 = int_to_ptr.vmem [resolvable:$true] %s164
          %170 = dma.hbm_to_vmem [thread:$0]  %s163, 4096, %s165, %s154, 64, 64, 4
        $region24: #{tpu_custom_call.1} parent=15 // pred_fallthru
          _
      $region16: #{tpu_custom_call.1} parent=5 // pred_fallthru
        _
      %p171 = scmp.le.s32.totalorder 1, %s15
      %p172 = scmp.lt.s32.totalorder %s15, 3
      %p173 = pnand %p171, %p172
      %p174 = pneg %p173
      // Predicated region
      $region25: #{tpu_custom_call.1} parent=5 // pred_check
        _
      $region26: #{tpu_custom_call.1} parent=5 // pred_check_branch
        %176 = sbr.rel (%p173) target = $region28
      $region27: #{tpu_custom_call.1} parent=5 // pred_region
        %s177 = ssub.s32 %s15, 1
        %s178 = sand.u32 %s42, 1
        %s179 = scalar_lea.sflag [#allocation4], %s178
        %s180 = sand.u32 %s42, 1
        %s181 = smul.addr %s180, 32
        %s182 = scalar_lea.vmem [#allocation3], %s181
        // Predicated region
        $region29: #{tpu_custom_call.1} parent=27 // pred_check
          %p183 = pneg %p55
        $region30: #{tpu_custom_call.1} parent=27 // pred_check_branch
          %185 = sbr.rel (%p183) target = $region32
        $region31: #{tpu_custom_call.1} parent=27 // pred_region
          %186 = dma.done %s179, 512
        $region32: #{tpu_custom_call.1} parent=27 // pred_fallthru
          _
        %s187 = sand.u32 %s68, 1
        %s188 = scalar_lea.sflag [#allocation7], %s187
        %s189 = sand.u32 %s68, 1
        %s190 = smul.addr %s189, 256
        %s191 = scalar_lea.vmem [#allocation6], %s190
        // Predicated region
        $region33: #{tpu_custom_call.1} parent=27 // pred_check
          %p192 = pneg %p81
        $region34: #{tpu_custom_call.1} parent=27 // pred_check_branch
          %194 = sbr.rel (%p192) target = $region36
        $region35: #{tpu_custom_call.1} parent=27 // pred_region
          %195 = dma.done %s188, 4096
        $region36: #{tpu_custom_call.1} parent=27 // pred_fallthru
          _
        %s196 = sand.u32 %s42, 1
        %s197 = scalar_lea.sflag [#allocation4], %s196
        %s198 = sand.u32 %s42, 1
        %s199 = smul.addr %s198, 32
        %s200 = scalar_lea.vmem [#allocation3], %s199
        %p201 = pneg %p55
        %p202 = pneg %p52
        %s203 = sand.u32 %s68, 1
        %s204 = scalar_lea.sflag [#allocation7], %s203
        %s205 = sand.u32 %s68, 1
        %s206 = smul.addr %s205, 256
        %s207 = scalar_lea.vmem [#allocation6], %s206
        %p208 = pneg %p81
        %p209 = pneg %p78
        %p210 = pneg %p107
        %p211 = pneg %p104
        %s212 = smul.u32 2, %s24
        %s213 = smul.u32 4, %s25
        %s214 = smul.u32 64, %s25
        %s215 = smul.u32 2, %s24
        %p217 = scmp.eq.s32.totalorder %s25, 0
        // Predicated region
        $region37: #{tpu_custom_call.1} parent=27 // pred_check
          %p218 = pneg %p217
        $region38: #{tpu_custom_call.1} parent=27 // pred_check_branch
          %220 = sbr.rel (%p218) target = $region40
        $region39: #{tpu_custom_call.1} parent=27 // pred_region
          %221 = vst [vmem:[#allocation2] sm:$0xff] 0.0
          %222 = vst [vmem:[#allocation2 + $0x8] sm:$0xff] 0.0
        $region40: #{tpu_custom_call.1} parent=27 // pred_fallthru
          _
        %v223 = vld [vmem:[#allocation2] sm:$0xff]
        %v224 = vld [vmem:[#allocation2 + $0x8] sm:$0xff]
        %v225 = vld [vmem:[%s182] sm:$0xff]
        %v226 = vld [vmem:[%s182 + $0x8] sm:$0xff]
        %v227 = vld [vmem:[%s182 + $0x10] sm:$0xff]
        %v228 = vld [vmem:[%s182 + $0x18] sm:$0xff]
        %v229 = vld [vmem:[%s191] sm:$0xf]
        %v230 = vld [vmem:[%s191 + $0x4] sm:$0xf]
        %v231 = vld [vmem:[%s191 + $0x8] sm:$0xf]
        %v232 = vld [vmem:[%s191 + $0xc] sm:$0xf]
        %v233 = vld [vmem:[%s191 + $0x10] sm:$0xf]
        %v234 = vld [vmem:[%s191 + $0x14] sm:$0xf]
        %v235 = vld [vmem:[%s191 + $0x18] sm:$0xf]
        %v236 = vld [vmem:[%s191 + $0x1c] sm:$0xf]
        %v237 = vld [vmem:[%s191 + $0x20] sm:$0xf]
        %v238 = vld [vmem:[%s191 + $0x24] sm:$0xf]
        %v239 = vld [vmem:[%s191 + $0x28] sm:$0xf]
        %v240 = vld [vmem:[%s191 + $0x2c] sm:$0xf]
        %v241 = vld [vmem:[%s191 + $0x30] sm:$0xf]
        %v242 = vld [vmem:[%s191 + $0x34] sm:$0xf]
        %v243 = vld [vmem:[%s191 + $0x38] sm:$0xf]
        %v244 = vld [vmem:[%s191 + $0x3c] sm:$0xf]
        %v245 = vld [vmem:[%s191 + $0x40] sm:$0xf]
        %v246 = vld [vmem:[%s191 + $0x44] sm:$0xf]
        %v247 = vld [vmem:[%s191 + $0x48] sm:$0xf]
        %v248 = vld [vmem:[%s191 + $0x4c] sm:$0xf]
        %v249 = vld [vmem:[%s191 + $0x50] sm:$0xf]
        %v250 = vld [vmem:[%s191 + $0x54] sm:$0xf]
        %v251 = vld [vmem:[%s191 + $0x58] sm:$0xf]
        %v252 = vld [vmem:[%s191 + $0x5c] sm:$0xf]
        %v253 = vld [vmem:[%s191 + $0x60] sm:$0xf]
        %v254 = vld [vmem:[%s191 + $0x64] sm:$0xf]
        %v255 = vld [vmem:[%s191 + $0x68] sm:$0xf]
        %v256 = vld [vmem:[%s191 + $0x6c] sm:$0xf]
        %v257 = vld [vmem:[%s191 + $0x70] sm:$0xf]
        %v258 = vld [vmem:[%s191 + $0x74] sm:$0xf]
        %v259 = vld [vmem:[%s191 + $0x78] sm:$0xf]
        %v260 = vld [vmem:[%s191 + $0x7c] sm:$0xf]
        %v261 = vld [vmem:[%s191 + $0x80] sm:$0xf]
        %v262 = vld [vmem:[%s191 + $0x84] sm:$0xf]
        %v263 = vld [vmem:[%s191 + $0x88] sm:$0xf]
        %v264 = vld [vmem:[%s191 + $0x8c] sm:$0xf]
        %v265 = vld [vmem:[%s191 + $0x90] sm:$0xf]
        %v266 = vld [vmem:[%s191 + $0x94] sm:$0xf]
        %v267 = vld [vmem:[%s191 + $0x98] sm:$0xf]
        %v268 = vld [vmem:[%s191 + $0x9c] sm:$0xf]
        %v269 = vld [vmem:[%s191 + $0xa0] sm:$0xf]
        %v270 = vld [vmem:[%s191 + $0xa4] sm:$0xf]
        %v271 = vld [vmem:[%s191 + $0xa8] sm:$0xf]
        %v272 = vld [vmem:[%s191 + $0xac] sm:$0xf]
        %v273 = vld [vmem:[%s191 + $0xb0] sm:$0xf]
        %v274 = vld [vmem:[%s191 + $0xb4] sm:$0xf]
        %v275 = vld [vmem:[%s191 + $0xb8] sm:$0xf]
        %v276 = vld [vmem:[%s191 + $0xbc] sm:$0xf]
        %v277 = vld [vmem:[%s191 + $0xc0] sm:$0xf]
        %v278 = vld [vmem:[%s191 + $0xc4] sm:$0xf]
        %v279 = vld [vmem:[%s191 + $0xc8] sm:$0xf]
        %v280 = vld [vmem:[%s191 + $0xcc] sm:$0xf]
        %v281 = vld [vmem:[%s191 + $0xd0] sm:$0xf]
        %v282 = vld [vmem:[%s191 + $0xd4] sm:$0xf]
        %v283 = vld [vmem:[%s191 + $0xd8] sm:$0xf]
        %v284 = vld [vmem:[%s191 + $0xdc] sm:$0xf]
        %v285 = vld [vmem:[%s191 + $0xe0] sm:$0xf]
        %v286 = vld [vmem:[%s191 + $0xe4] sm:$0xf]
        %v287 = vld [vmem:[%s191 + $0xe8] sm:$0xf]
        %v288 = vld [vmem:[%s191 + $0xec] sm:$0xf]
        %v289 = vld [vmem:[%s191 + $0xf0] sm:$0xf]
        %v290 = vld [vmem:[%s191 + $0xf4] sm:$0xf]
        %v291 = vld [vmem:[%s191 + $0xf8] sm:$0xf]
        %v292 = vld [vmem:[%s191 + $0xfc] sm:$0xf]
        %v297 = vunpack.c.l.b16 %v225
        %v298 = vunpack.c.h.b16 %v225
        %v299 = vunpack.c.l.b16 %v226
        %v300 = vunpack.c.h.b16 %v226
        %v301 = vunpack.c.l.b16 %v227
        %v302 = vunpack.c.h.b16 %v227
        %v303 = vunpack.c.l.b16 %v228
        %v304 = vunpack.c.h.b16 %v228
        %v305 = vpack.c.b16 %v301, %v297
        %v306 = vpack.c.b16 %v302, %v298
        %v307 = vpack.c.b16 %v303, %v299
        %v308 = vpack.c.b16 %v304, %v300
        %v377 = vunpack.c.l.b16 %v229
        %v378 = vunpack.c.l.b16 %v230
        %v379 = vunpack.c.l.b16 %v231
        %v380 = vunpack.c.l.b16 %v232
        %v381 = vunpack.c.l.b16 %v233
        %v382 = vunpack.c.l.b16 %v234
        %v383 = vunpack.c.l.b16 %v235
        %v384 = vunpack.c.l.b16 %v236
        %v385 = vunpack.c.l.b16 %v237
        %v386 = vunpack.c.l.b16 %v238
        %v387 = vunpack.c.l.b16 %v239
        %v388 = vunpack.c.l.b16 %v240
        %v389 = vunpack.c.l.b16 %v241
        %v390 = vunpack.c.l.b16 %v242
        %v391 = vunpack.c.l.b16 %v243
        %v392 = vunpack.c.l.b16 %v244
        %v393 = vunpack.c.l.b16 %v245
        %v394 = vunpack.c.l.b16 %v246
        %v395 = vunpack.c.l.b16 %v247
        %v396 = vunpack.c.l.b16 %v248
        %v397 = vunpack.c.l.b16 %v249
        %v398 = vunpack.c.l.b16 %v250
        %v399 = vunpack.c.l.b16 %v251
        %v400 = vunpack.c.l.b16 %v252
        %v401 = vunpack.c.l.b16 %v253
        %v402 = vunpack.c.l.b16 %v254
        %v403 = vunpack.c.l.b16 %v255
        %v404 = vunpack.c.l.b16 %v256
        %v405 = vunpack.c.l.b16 %v257
        %v406 = vunpack.c.l.b16 %v258
        %v407 = vunpack.c.l.b16 %v259
        %v408 = vunpack.c.l.b16 %v260
        %v409 = vunpack.c.l.b16 %v261
        %v410 = vunpack.c.l.b16 %v262
        %v411 = vunpack.c.l.b16 %v263
        %v412 = vunpack.c.l.b16 %v264
        %v413 = vunpack.c.l.b16 %v265
        %v414 = vunpack.c.l.b16 %v266
        %v415 = vunpack.c.l.b16 %v267
        %v416 = vunpack.c.l.b16 %v268
        %v417 = vunpack.c.l.b16 %v269
        %v418 = vunpack.c.l.b16 %v270
        %v419 = vunpack.c.l.b16 %v271
        %v420 = vunpack.c.l.b16 %v272
        %v421 = vunpack.c.l.b16 %v273
        %v422 = vunpack.c.l.b16 %v274
        %v423 = vunpack.c.l.b16 %v275
        %v424 = vunpack.c.l.b16 %v276
        %v425 = vunpack.c.l.b16 %v277
        %v426 = vunpack.c.l.b16 %v278
        %v427 = vunpack.c.l.b16 %v279
        %v428 = vunpack.c.l.b16 %v280
        %v429 = vunpack.c.l.b16 %v281
        %v430 = vunpack.c.l.b16 %v282
        %v431 = vunpack.c.l.b16 %v283
        %v432 = vunpack.c.l.b16 %v284
        %v433 = vunpack.c.l.b16 %v285
        %v434 = vunpack.c.l.b16 %v286
        %v435 = vunpack.c.l.b16 %v287
        %v436 = vunpack.c.l.b16 %v288
        %v437 = vunpack.c.l.b16 %v289
        %v438 = vunpack.c.l.b16 %v290
        %v439 = vunpack.c.l.b16 %v291
        %v440 = vunpack.c.l.b16 %v292
        %v441 = vpack.c.b16 %v378, %v377
        %v442 = vpack.c.b16 %v380, %v379
        %v443 = vpack.c.b16 %v382, %v381
        %v444 = vpack.c.b16 %v384, %v383
        %v445 = vpack.c.b16 %v386, %v385
        %v446 = vpack.c.b16 %v388, %v387
        %v447 = vpack.c.b16 %v390, %v389
        %v448 = vpack.c.b16 %v392, %v391
        %v449 = vpack.c.b16 %v394, %v393
        %v450 = vpack.c.b16 %v396, %v395
        %v451 = vpack.c.b16 %v398, %v397
        %v452 = vpack.c.b16 %v400, %v399
        %v453 = vpack.c.b16 %v402, %v401
        %v454 = vpack.c.b16 %v404, %v403
        %v455 = vpack.c.b16 %v406, %v405
        %v456 = vpack.c.b16 %v408, %v407
        %v457 = vpack.c.b16 %v410, %v409
        %v458 = vpack.c.b16 %v412, %v411
        %v459 = vpack.c.b16 %v414, %v413
        %v460 = vpack.c.b16 %v416, %v415
        %v461 = vpack.c.b16 %v418, %v417
        %v462 = vpack.c.b16 %v420, %v419
        %v463 = vpack.c.b16 %v422, %v421
        %v464 = vpack.c.b16 %v424, %v423
        %v465 = vpack.c.b16 %v426, %v425
        %v466 = vpack.c.b16 %v428, %v427
        %v467 = vpack.c.b16 %v430, %v429
        %v468 = vpack.c.b16 %v432, %v431
        %v469 = vpack.c.b16 %v434, %v433
        %v470 = vpack.c.b16 %v436, %v435
        %v471 = vpack.c.b16 %v438, %v437
        %v472 = vpack.c.b16 %v440, %v439
        %505 = vmatprep.subr.bf16.mxu0 0
        %506 = vmatpush1.bf16.msra.mxu0 %v441
        %507 = vmatprep.subr.bf16.mxu0 0
        %508 = vmatpush1.bf16.msra.mxu0 %v442
        %509 = vmatprep.subr.bf16.mxu0 0
        %510 = vmatpush1.bf16.msra.mxu0 %v443
        %511 = vmatprep.subr.bf16.mxu0 0
        %512 = vmatpush1.bf16.msra.mxu0 %v444
        %513 = vmatprep.subr.bf16.mxu0 0
        %514 = vmatpush1.bf16.msra.mxu0 %v445
        %515 = vmatprep.subr.bf16.mxu0 0
        %516 = vmatpush1.bf16.msra.mxu0 %v446
        %517 = vmatprep.subr.bf16.mxu0 0
        %518 = vmatpush1.bf16.msra.mxu0 %v447
        %519 = vmatprep.subr.bf16.mxu0 0
        %520 = vmatpush1.bf16.msra.mxu0 %v448
        %521 = vmatprep.subr.bf16.mxu0 0
        %522 = vmatpush1.bf16.msra.mxu0 %v449
        %523 = vmatprep.subr.bf16.mxu0 0
        %524 = vmatpush1.bf16.msra.mxu0 %v450
        %525 = vmatprep.subr.bf16.mxu0 0
        %526 = vmatpush1.bf16.msra.mxu0 %v451
        %527 = vmatprep.subr.bf16.mxu0 0
        %528 = vmatpush1.bf16.msra.mxu0 %v452
        %529 = vmatprep.subr.bf16.mxu0 0
        %530 = vmatpush1.bf16.msra.mxu0 %v453
        %531 = vmatprep.subr.bf16.mxu0 0
        %532 = vmatpush1.bf16.msra.mxu0 %v454
        %533 = vmatprep.subr.bf16.mxu0 0
        %534 = vmatpush1.bf16.msra.mxu0 %v455
        %535 = vmatprep.subr.bf16.mxu0 0
        %536 = vmatpush1.bf16.msra.mxu0 %v456
        %537 = vmatprep.mubr.bf16.mxu0 %v306
        %538 = vmatmul.mubr.bf16.gmra.mrb[0].mxu0 %v305
        %v539 = vpop.f32.mrb[0].mxu0
        %v540 = vadd.f32 0.0, %v539
        %v541 = vpop.f32.mrb[0].mxu0
        %v542 = vpop.f32.mrb[0].mxu0
        %v543 = vadd.f32 0.0, %v542
        %v544 = vpop.f32.mrb[0].mxu0
        %545 = vdwg.mxu0
        %546 = vmatprep.subr.bf16.mxu0 0
        %547 = vmatpush1.bf16.msra.mxu0 %v457
        %548 = vmatprep.subr.bf16.mxu0 0
        %549 = vmatpush1.bf16.msra.mxu0 %v458
        %550 = vmatprep.subr.bf16.mxu0 0
        %551 = vmatpush1.bf16.msra.mxu0 %v459
        %552 = vmatprep.subr.bf16.mxu0 0
        %553 = vmatpush1.bf16.msra.mxu0 %v460
        %554 = vmatprep.subr.bf16.mxu0 0
        %555 = vmatpush1.bf16.msra.mxu0 %v461
        %556 = vmatprep.subr.bf16.mxu0 0
        %557 = vmatpush1.bf16.msra.mxu0 %v462
        %558 = vmatprep.subr.bf16.mxu0 0
        %559 = vmatpush1.bf16.msra.mxu0 %v463
        %560 = vmatprep.subr.bf16.mxu0 0
        %561 = vmatpush1.bf16.msra.mxu0 %v464
        %562 = vmatprep.subr.bf16.mxu0 0
        %563 = vmatpush1.bf16.msra.mxu0 %v465
        %564 = vmatprep.subr.bf16.mxu0 0
        %565 = vmatpush1.bf16.msra.mxu0 %v466
        %566 = vmatprep.subr.bf16.mxu0 0
        %567 = vmatpush1.bf16.msra.mxu0 %v467
        %568 = vmatprep.subr.bf16.mxu0 0
        %569 = vmatpush1.bf16.msra.mxu0 %v468
        %570 = vmatprep.subr.bf16.mxu0 0
        %571 = vmatpush1.bf16.msra.mxu0 %v469
        %572 = vmatprep.subr.bf16.mxu0 0
        %573 = vmatpush1.bf16.msra.mxu0 %v470
        %574 = vmatprep.subr.bf16.mxu0 0
        %575 = vmatpush1.bf16.msra.mxu0 %v471
        %576 = vmatprep.subr.bf16.mxu0 0
        %577 = vmatpush1.bf16.msra.mxu0 %v472
        %578 = vmatprep.mubr.bf16.mxu0 %v308
        %579 = vmatmul.mubr.bf16.gmra.mrb[0].mxu0 %v307
        %v580 = vpop.f32.mrb[0].mxu0
        %v581 = vadd.f32 %v540, %v580
        %v582 = vpop.f32.mrb[0].mxu0
        %v583 = vpop.f32.mrb[0].mxu0
        %v584 = vadd.f32 %v543, %v583
        %v585 = vpop.f32.mrb[0].mxu0
        %586 = vdwg.mxu0
        %v587 = vadd.f32 %v223, %v581
        %v588 = vadd.f32 %v224, %v584
        %589 = vst [vmem:[#allocation2] sm:$0xff] %v587
        %590 = vst [vmem:[#allocation2 + $0x8] sm:$0xff] %v588
        %p591 = scmp.eq.s32.totalorder %s25, 1
        // Predicated region
        $region41: #{tpu_custom_call.1} parent=27 // pred_check
          %p592 = pneg %p591
        $region42: #{tpu_custom_call.1} parent=27 // pred_check_branch
          %594 = sbr.rel (%p592) target = $region44
        $region43: #{tpu_custom_call.1} parent=27 // pred_region
          %v595 = vld [vmem:[#allocation2] sm:$0xff]
          %v596 = vld [vmem:[#allocation2 + $0x8] sm:$0xff]
          %v597 = vmul.f32 %v595, %v595
          %v598 = vmul.f32 %v596, %v596
          %599 = vadd.xlane.f32.xlu0 %v597
          %v600 = vpop.xlane.xlu0 %599
          %601 = vadd.xlane.f32.xlu0 %v598
          %v602 = vpop.xlane.xlu0 %601
          %v603 = vrsqrt.pop %v600
          %v604 = vrsqrt.pop %v602
          %v605 = vmul.f32 %v595, %v603
          %v606 = vmul.f32 %v596, %v604
          %607 = vst [vmem:[#allocation8] sm:$0xff] %v605
          %608 = vst [vmem:[#allocation8 + $0x8] sm:$0xff] %v606
        $region44: #{tpu_custom_call.1} parent=27 // pred_fallthru
          _
        // Predicated region
        $region45: #{tpu_custom_call.1} parent=27 // pred_check
          %p609 = pneg %p104
        $region46: #{tpu_custom_call.1} parent=27 // pred_check_branch
          %611 = sbr.rel (%p609) target = $region48
        $region47: #{tpu_custom_call.1} parent=27 // pred_region
          %s612 = smul.u32 2, %s24
          %s614 = ssub.s32 256, 256
          %615 = vsyncadd [#allocation5], %s614
          %s616 = smul.addr %s612, 128
          %s617 = scalar_lea.hbm %s2, %s616
          %s618 = sshll.u32 [#allocation8], 4
          %s619 = int_to_ptr.vmem [resolvable:$true] %s618
          %624 = dma.vmem_to_hbm [thread:$0]  %s619, 256, %s617, [#allocation5], 128, 128, 8
        $region48: #{tpu_custom_call.1} parent=27 // pred_fallthru
          _
        // Predicated region
        $region49: #{tpu_custom_call.1} parent=27 // pred_check
          %p625 = pneg %p104
        $region50: #{tpu_custom_call.1} parent=27 // pred_check_branch
          %627 = sbr.rel (%p625) target = $region52
        $region51: #{tpu_custom_call.1} parent=27 // pred_region
          %628 = dma.done [#allocation5], 256
        $region52: #{tpu_custom_call.1} parent=27 // pred_fallthru
          _
      $region28: #{tpu_custom_call.1} parent=5 // pred_fallthru
        _
      %p629 = scmp.le.s32.totalorder 2, %s15
      // Predicated region
      $region53: #{tpu_custom_call.1} parent=5 // pred_check
        %p630 = pneg %p629
      $region54: #{tpu_custom_call.1} parent=5 // pred_check_branch
        %632 = sbr.rel (%p630) target = $region56
      $region55: #{tpu_custom_call.1} parent=5 // pred_region
        %s633 = ssub.s32 %s15, 2
      $region56: #{tpu_custom_call.1} parent=5 // pred_fallthru
        _
    $region6: #{tpu_custom_call.1} parent=1 // loop_footer
      %s19 = sadd.s32 1, %s15
    $region7: #{tpu_custom_call.1} parent=1 // loop_footer_branch
      %14 = sbr.rel target = $region3
    $region8: #{tpu_custom_call.1} parent=1 // loop_exit
      _
    %634 = vsyncpa [#allocation4], 1
    %s635 = scalar_lea.sflag [#allocation4], 1
    %636 = vsyncpa %s635, 1
    %637 = vsyncpa [#allocation7], 1
    %s638 = scalar_lea.sflag [#allocation7], 1
    %639 = vsyncpa %s638, 1
    %640 = vsyncpa [#allocation5], 1
    %s641 = scalar_lea.sflag [#allocation5], 1
    %642 = vsyncpa %s641, 1

</llo_original>
